<compile_context>
chip_gen: v5e
topology: v5e:2x2
jax: 0.10.0
libtpu: 0.0.40
codegen_flags: <defaults>
</compile_context>

<pallas_src>
import functools

import jax
import jax.numpy as jnp
from jax.experimental import pallas as pl
from jax.experimental.pallas import tpu as pltpu


# ---------------------------------------------------------------------------
# One-time hardware probing (safe fallbacks if probing is unavailable).
# ---------------------------------------------------------------------------
def _vmem_budget_bytes():
    try:
        cap = pltpu.get_tpu_info().vmem_capacity_bytes
    except Exception:
        # Conservative default sized for the smallest per-core VMEM (v7x, 64 MiB).
        cap = 64 * 1024 * 1024
    # Leave ~25% headroom for Mosaic's own scratch / semaphores / metadata:
    #   128 MiB (v5e/v6e) -> ~96 MiB usable, 64 MiB (v7x) -> ~48 MiB usable.
    return int(min(cap * 3 // 4, 100 * 1024 * 1024))


def _is_multi_tensorcore_chip():
    # v7x has 2 TensorCores per chip; v5e / v6e have 1.
    try:
        kind = jax.devices()[0].device_kind.lower()
    except Exception:
        return False
    return "v7" in kind


_VMEM_BUDGET = _vmem_budget_bytes()
_MULTI_TC = _is_multi_tensorcore_chip()


def _round_up(x, m):
    return ((x + m - 1) // m) * m


# ---------------------------------------------------------------------------
# Kernel: one (i, j, k) grid step of relu(x @ W^T + b).
# ---------------------------------------------------------------------------
def _linear_relu_kernel(x_ref, wt_ref, b_ref, o_ref, acc_ref):
    # x_ref:   (tm, tk)  activation tile
    # wt_ref:  (tk, tn)  weight tile, stored (IN, OUT): canonical MXU layout
    # b_ref:   (1,  tn)  bias row (f32)
    # o_ref:   (tm, tn)  output tile, written on the last K step only
    # acc_ref: (tm, tn)  f32 accumulator scratch, resident across the K axis
    @pl.when(pl.program_id(2) == 0)
    def _init():
        acc_ref[...] = jnp.zeros_like(acc_ref)

    x = x_ref[...]
    w = wt_ref[...]
    if x.dtype != w.dtype:  # bf16-weight path: cast activations in-kernel
        x = x.astype(w.dtype)
    acc_ref[...] += jnp.dot(x, w, preferred_element_type=jnp.float32)

    @pl.when(pl.program_id(2) == pl.num_programs(2) - 1)
    def _finalize():
        acc = acc_ref[...] + b_ref[...].astype(jnp.float32)
        o_ref[...] = jnp.maximum(acc, 0.0).astype(o_ref.dtype)


# ---------------------------------------------------------------------------
# Tile selection.
# ---------------------------------------------------------------------------
def _choose_tiles(B, IN, OUT, op_itemsize, out_itemsize, row_align):
    budget = _VMEM_BUDGET

    # N (OUT) tiling: lane-dense, MXU-width tiles (prefer 256 on v6e/v7x).
    n_pad = _round_up(OUT, 128)
    if n_pad <= 512:
        tn = n_pad
    elif n_pad % 256 == 0:
        tn = 256
    else:
        tn = 128

    def usage(tm, tk, tn):
        return (2 * tm * tk * op_itemsize      # x tile   (double-buffered)
                + 2 * tk * tn * op_itemsize    # W^T tile (double-buffered)
                + 2 * 1 * tn * out_itemsize    # bias row (double-buffered)
                + 2 * tm * tn * out_itemsize   # out tile (double-buffered)
                + tm * tn * 4)                 # f32 accumulator scratch

    # K (IN) tiling: keep full K resident when it fits alongside minimal
    # M/N tiles, otherwise 512-wide K tiles (multiple of 128 -> lane-aligned).
    if usage(row_align, IN, tn) <= budget:
        tk, k_pad = IN, IN
    else:
        tk = 512
        k_pad = _round_up(IN, tk)

    # M (batch) tiling: largest multiple of row_align that fits, capped at 512
    # rows (measured ~85% of HBM roofline; bigger gives marginal gains).
    m_pad = _round_up(B, row_align)
    cap = min(m_pad, 512)
    tm = row_align
    t = row_align
    while t <= cap:
        if usage(t, tk, tn) <= budget:
            tm = t
        t += row_align
    m_pad = _round_up(B, tm)

    # v7x megacore: prefer an even number of batch tiles so the "parallel" M
    # axis balances across both TensorCores; never shrink tm on 1-TC chips.
    if _MULTI_TC:
        num_m = m_pad // tm
        if num_m % 2 == 1 and m_pad > row_align:
            tm = _round_up(-(-m_pad // (num_m + 1)), row_align)
            m_pad = _round_up(B, tm)

    return tm, tk, tn, m_pad, k_pad, n_pad


# ---------------------------------------------------------------------------
# Wrapper: relu(x @ w.T + b) as a single fused Pallas TPU kernel.
# ---------------------------------------------------------------------------
@functools.partial(jax.jit, static_argnames=("use_bf16",))
def linear_relu(x, w, b, *, use_bf16=False):
    """x: (B, IN); w: (OUT, IN) nn.Linear layout; b: (OUT,). Returns (B, OUT)."""
    B, IN = x.shape
    OUT, IN_w = w.shape
    assert IN == IN_w, "weight must be (out_features, in_features)"
    out_dtype = x.dtype

    # One-time relayout of the invariant weight to canonical (IN, OUT).
    wt = w.T
    if use_bf16:
        wt = wt.astype(jnp.bfloat16)  # halves W HBM traffic & VMEM footprint

    op_itemsize = wt.dtype.itemsize            # matmul-operand itemsize
    out_itemsize = jnp.dtype(out_dtype).itemsize
    row_align = 16 if wt.dtype == jnp.bfloat16 else 8

    tm, tk, tn, m_pad, k_pad, n_pad = _choose_tiles(
        B, IN, OUT, op_itemsize, out_itemsize, row_align)

    # Zero-pad to tile-aligned shapes (padded K columns contribute 0 to the
    # accumulation; padded M rows / N columns are sliced off the output).
    x_p = x if (m_pad == B and k_pad == IN) else jnp.pad(
        x, ((0, m_pad - B), (0, k_pad - IN)))
    wt_p = wt if (k_pad == IN and n_pad == OUT) else jnp.pad(
        wt, ((0, k_pad - IN), (0, n_pad - OUT)))
    b_p = b if n_pad == OUT else jnp.pad(b, (0, n_pad - OUT))
    b2d = b_p.reshape(1, n_pad).astype(jnp.float32)

    grid = (m_pad // tm, n_pad // tn, k_pad // tk)

    cost = pl.CostEstimate(
        flops=2 * m_pad * k_pad * n_pad,
        transcendentals=0,
        bytes_accessed=(m_pad * k_pad * x_p.dtype.itemsize
                        + k_pad * n_pad * wt_p.dtype.itemsize
                        + n_pad * 4
                        + m_pad * n_pad * out_itemsize),
    )

    out_p = pl.pallas_call(
        _linear_relu_kernel,
        out_shape=jax.ShapeDtypeStruct((m_pad, n_pad), out_dtype),
        grid_spec=pltpu.PrefetchScalarGridSpec(
            num_scalar_prefetch=0,
            grid=grid,
            in_specs=[
                pl.BlockSpec((tm, tk), lambda i, j, k: (i, k)),   # x tile
                pl.BlockSpec((tk, tn), lambda i, j, k: (k, j)),   # W^T tile
                pl.BlockSpec((1, tn), lambda i, j, k: (0, j)),    # bias row
            ],
            out_specs=pl.BlockSpec((tm, tn), lambda i, j, k: (i, j)),
            scratch_shapes=[pltpu.VMEM((tm, tn), jnp.float32)],
        ),
        compiler_params=pltpu.CompilerParams(
            dimension_semantics=("parallel", "parallel", "arbitrary"),
            vmem_limit_bytes=_VMEM_BUDGET,
        ),
        cost_estimate=cost,
    )(x_p, wt_p, b2d)

    return out_p[:B, :OUT]


def init_params(key, in_features, out_features, divisor, dtype=jnp.float32):
    """Deterministic init mimicking nn.Linear (uniform +-1/sqrt(in)) then /divisor."""
    kw, kb = jax.random.split(key)
    bound = 1.0 / (in_features ** 0.5)
    w = jax.random.uniform(
        kw, (out_features, in_features), dtype, minval=-bound, maxval=bound)
    b = jax.random.uniform(
        kb, (out_features,), dtype, minval=-bound, maxval=bound)
    return w / divisor, b / divisor


def _ref(x, w, b):
    return jnp.maximum(
        jnp.dot(x, w.T, precision=jax.lax.Precision.HIGHEST) + b, 0.0)


if __name__ == "__main__":
    key = jax.random.PRNGKey(0)
    kx, kp = jax.random.split(key)

    # 1) Small shapes consistent with the module's forward: x is (batch, in).
    batch, in_features, out_features, divisor = 8, 32, 128, 2.0
    x = jax.random.normal(kx, (batch, in_features), jnp.float32)
    w, b = init_params(kp, in_features, out_features, divisor)
    out = jax.block_until_ready(linear_relu(x, w, b))
    assert out.shape == (batch, out_features)
    assert jnp.allclose(out, _ref(x, w, b), atol=1e-4, rtol=1e-4)

    # 2) Unaligned shapes: exercises M/N padding + slicing.
    b2, i2, o2 = 100, 96, 200
    x2 = jax.random.normal(kx, (b2, i2), jnp.float32)
    w2, bias2 = init_params(kp, i2, o2, divisor)
    out2 = jax.block_until_ready(linear_relu(x2, w2, bias2))
    assert out2.shape == (b2, o2)
    assert jnp.allclose(out2, _ref(x2, w2, bias2), atol=1e-4, rtol=1e-4)

    # 3) Wider output: exercises the N-tiled (grid_n > 1) path.
    b3, i3, o3 = 64, 256, 640
    x3 = jax.random.normal(kx, (b3, i3), jnp.float32)
    w3, bias3 = init_params(kp, i3, o3, divisor)
    out3 = jax.block_until_ready(linear_relu(x3, w3, bias3))
    assert out3.shape == (b3, o3)
    assert jnp.allclose(out3, _ref(x3, w3, bias3), atol=1e-4, rtol=1e-4)

    # 4) Optional bf16-weight path (f32 accumulation), looser tolerance.
    out4 = jax.block_until_ready(linear_relu(x2, w2, bias2, use_bf16=True))
    assert jnp.allclose(out4, _ref(x2, w2, bias2), atol=5e-2, rtol=5e-2)

    print("KERNEL_OK")
</pallas_src>

<mosaic_0001>
module attributes {stable_mosaic.version = 11 : i64} {
  func.func @_linear_relu_kernel(%arg0: i32, %arg1: i32, %arg2: i32, %arg3: memref<8x32xf32, #tpu.memory_space<vmem>>, %arg4: memref<32x128xf32, #tpu.memory_space<vmem>>, %arg5: memref<1x128xf32, #tpu.memory_space<vmem>>, %arg6: memref<8x128xf32, #tpu.memory_space<vmem>>, %arg7: memref<8x128xf32, #tpu.memory_space<vmem>>) attributes {dimension_semantics = [#tpu.dimension_semantics<parallel>, #tpu.dimension_semantics<parallel>, #tpu.dimension_semantics<arbitrary>], iteration_bounds = array<i64: 1, 1, 1>, scalar_prefetch = 0 : i64, scratch_operands = 1 : i64, tpu.core_type = #tpu.core_type<tc>, window_params = [{transform_indices = @transform_0, window_bounds = array<i64: 8, 32>}, {transform_indices = @transform_1, window_bounds = array<i64: 32, 128>}, {transform_indices = @transform_2, window_bounds = array<i64: 1, 128>}, {transform_indices = @transform_3, window_bounds = array<i64: 8, 128>}]} {
    %c0_i32 = arith.constant 0 : i32
    %0 = arith.cmpi eq, %arg2, %c0_i32 : i32
    %1 = arith.extui %0 : i1 to i32
    %c0_i32_0 = arith.constant 0 : i32
    %2 = arith.cmpi ne, %1, %c0_i32_0 : i32
    scf.if %2 {
      %cst_10 = arith.constant 0.000000e+00 : f32
      %12 = vector.broadcast %cst_10 : f32 to vector<8x128xf32>
      %c0_11 = arith.constant 0 : index
      %c0_12 = arith.constant 0 : index
      %13 = vector.load %arg7[%c0_11, %c0_12] : memref<8x128xf32, #tpu.memory_space<vmem>>, vector<8x128xf32>
      tpu.vector_store %arg7[%c0_11, %c0_12], %12 {strides = array<i32>} : memref<8x128xf32, #tpu.memory_space<vmem>>, vector<8x128xf32>,
    } else {
    }
    %c0 = arith.constant 0 : index
    %c0_1 = arith.constant 0 : index
    %3 = vector.load %arg3[%c0, %c0_1] : memref<8x32xf32, #tpu.memory_space<vmem>>, vector<8x32xf32>
    %c0_2 = arith.constant 0 : index
    %c0_3 = arith.constant 0 : index
    %4 = vector.load %arg4[%c0_2, %c0_3] : memref<32x128xf32, #tpu.memory_space<vmem>>, vector<32x128xf32>
    %c0_4 = arith.constant 0 : index
    %c0_5 = arith.constant 0 : index
    %5 = vector.load %arg7[%c0_4, %c0_5] : memref<8x128xf32, #tpu.memory_space<vmem>>, vector<8x128xf32>
    %cst = arith.constant dense<0.000000e+00> : vector<8x128xf32>
    %6 = tpu.matmul %3, %4, %cst {dimension_numbers = #tpu.dot_dimension_numbers<[1], [0], [0], [1], [0, 0, 1, 1], [], []>} : vector<8x32xf32>, vector<32x128xf32>, vector<8x128xf32> -> vector<8x128xf32>
    %7 = arith.addf %5, %6 : vector<8x128xf32>
    %c0_6 = arith.constant 0 : index
    %c0_7 = arith.constant 0 : index
    %8 = vector.load %arg7[%c0_6, %c0_7] : memref<8x128xf32, #tpu.memory_space<vmem>>, vector<8x128xf32>
    tpu.vector_store %arg7[%c0_6, %c0_7], %7 {strides = array<i32>} : memref<8x128xf32, #tpu.memory_space<vmem>>, vector<8x128xf32>,
    %c0_i32_8 = arith.constant 0 : i32
    %9 = arith.cmpi eq, %arg2, %c0_i32_8 : i32
    %10 = arith.extui %9 : i1 to i32
    %c0_i32_9 = arith.constant 0 : i32
    %11 = arith.cmpi ne, %10, %c0_i32_9 : i32
    scf.if %11 {
      %c0_10 = arith.constant 0 : index
      %c0_11 = arith.constant 0 : index
      %12 = vector.load %arg7[%c0_10, %c0_11] : memref<8x128xf32, #tpu.memory_space<vmem>>, vector<8x128xf32>
      %c0_12 = arith.constant 0 : index
      %c0_13 = arith.constant 0 : index
      %13 = vector.load %arg5[%c0_12, %c0_13] : memref<1x128xf32, #tpu.memory_space<vmem>>, vector<1x128xf32>
      %14 = vector.broadcast %13 : vector<1x128xf32> to vector<8x128xf32>
      %15 = arith.addf %12, %14 : vector<8x128xf32>
      %cst_14 = arith.constant 0.000000e+00 : f32
      %16 = vector.broadcast %cst_14 : f32 to vector<8x128xf32>
      %17 = arith.maximumf %15, %16 : vector<8x128xf32>
      %c0_15 = arith.constant 0 : index
      %c0_16 = arith.constant 0 : index
      %18 = vector.load %arg6[%c0_15, %c0_16] : memref<8x128xf32, #tpu.memory_space<vmem>>, vector<8x128xf32>
      tpu.vector_store %arg6[%c0_15, %c0_16], %17 {strides = array<i32>} : memref<8x128xf32, #tpu.memory_space<vmem>>, vector<8x128xf32>,
    } else {
    }
    return
  }
  func.func @transform_0(%arg0: i32, %arg1: i32, %arg2: i32) -> (i32, i32) {
    %c0_i32 = arith.constant 0 : i32
    return %arg0, %arg2 : i32, i32
  }
  func.func @transform_1(%arg0: i32, %arg1: i32, %arg2: i32) -> (i32, i32) {
    %c0_i32 = arith.constant 0 : i32
    return %arg2, %arg1 : i32, i32
  }
  func.func @transform_2(%arg0: i32, %arg1: i32, %arg2: i32) -> (i32, i32) {
    %c0_i32 = arith.constant 0 : i32
    %c0_i32_0 = arith.constant 0 : i32
    return %c0_i32, %arg1 : i32, i32
  }
  func.func @transform_3(%arg0: i32, %arg1: i32, %arg2: i32) -> (i32, i32) {
    %c0_i32 = arith.constant 0 : i32
    return %arg0, %arg1 : i32, i32
  }
}

</mosaic_0001>

<llo_original>
// kernel: linear_relu.1
$region0: #{linear_relu.1}
  #allocation0 [shape = 'u32[]', space=smem, size = 0x4, offset = 0x4, fixed_abs, tag = 'smem constant byte address 0x4 - core index']
  #allocation1 [shape = 'u32[72,128]{1,0:T(1,128)}', space=vmem, size = 0x9000, scoped, tag = 'internal scratch']
  #allocation2 [shape = 'f32[8,128]{1,0:T(8,128)}', space=vmem, size = 0x1000, scoped, tag = 'scratch operand']
  %s0 = inlined_call_operand.hbm [shape: f32[8,32], index: 0, kind: input, shape index: {}]
  %s1 = inlined_call_operand.hbm [shape: f32[32,128], index: 1, kind: input, shape index: {}]
  %s2 = inlined_call_operand.vmem [shape: f32[1,128], index: 2, kind: input, shape index: {}]
  %s3 = inlined_call_operand.hbm [shape: f32[8,128], index: 3, kind: output, shape index: {}]
  %s4 = sld [smem:[#allocation0]]
  $region38: #{linear_relu.1} parent=0
    _
  %s6 = ssub.s32 1, %s4
  %s7 = scalar_select 0, %s6, %s4
  $region1: #{linear_relu.1} parent=0
    #allocation3 [shape = 'u8[4096]{0}', space=vmem, size = 0x1000, scoped, tag = 'input window, operand 0, single buffered']
    #allocation4 [shape = 's32[1]{0}', space=sflag, size = 0x4, scoped, tag = 'scoped memory for linear_relu.1']
    #allocation5 [shape = 's32[1]{0}', space=sflag, size = 0x4, scoped, tag = 'scoped memory for linear_relu.1']
    #allocation6 [shape = 'u8[16384]{0}', space=vmem, size = 0x4000, scoped, tag = 'input window, operand 1, single buffered']
    #allocation7 [shape = 's32[1]{0}', space=sflag, size = 0x4, scoped, tag = 'scoped memory for linear_relu.1']
    #allocation8 [shape = 'u8[4096]{0}', space=vmem, size = 0x1000, scoped, tag = 'output window, operand 0, single buffered']
    %8 = vsyncpa [#allocation4], 0
    %9 = vsyncpa [#allocation7], 0
    %10 = vsyncpa [#allocation5], 0
    // Predicated region
    $region2: #{linear_relu.1} parent=1 // pred_check
      _
    $region3: #{linear_relu.1} parent=1 // pred_check_branch
      %12 = sbr.rel (0) target = $region5
    $region4: #{linear_relu.1} parent=1 // pred_region
      %14 = vsyncadd [#allocation4], 0
      %s16 = sshll.u32 %s0, 4
      %s17 = int_to_ptr.hbm [resolvable:$true] %s16
      %s18 = sshll.u32 [#allocation3], 4
      %s19 = int_to_ptr.vmem [resolvable:$true] %s18
      %21 = dma.hbm_to_vmem [thread:$0]  %s17, 128, %s19, [#allocation4]
    $region5: #{linear_relu.1} parent=1 // pred_fallthru
      _
    // Predicated region
    $region6: #{linear_relu.1} parent=1 // pred_check
      _
    $region7: #{linear_relu.1} parent=1 // pred_check_branch
      %23 = sbr.rel (0) target = $region9
    $region8: #{linear_relu.1} parent=1 // pred_region
      %25 = vsyncadd [#allocation7], 0
      %s26 = sshll.u32 %s1, 4
      %s27 = int_to_ptr.hbm [resolvable:$true] %s26
      %s28 = sshll.u32 [#allocation6], 4
      %s29 = int_to_ptr.vmem [resolvable:$true] %s28
      %34 = dma.hbm_to_vmem [thread:$0]  %s27, 512, %s29, [#allocation7], 128, 128, 8
    $region9: #{linear_relu.1} parent=1 // pred_fallthru
      _
    // Predicated region
    $region10: #{linear_relu.1} parent=1 // pred_check
      _
    $region11: #{linear_relu.1} parent=1 // pred_check_branch
      %36 = sbr.rel (0) target = $region13
    $region12: #{linear_relu.1} parent=1 // pred_region
      _
    $region13: #{linear_relu.1} parent=1 // pred_fallthru
      _
    // Predicated region
    $region14: #{linear_relu.1} parent=1 // pred_check
      _
    $region15: #{linear_relu.1} parent=1 // pred_check_branch
      %38 = sbr.rel (0) target = $region17
    $region16: #{linear_relu.1} parent=1 // pred_region
      %40 = dma.done [#allocation4], 128
    $region17: #{linear_relu.1} parent=1 // pred_fallthru
      _
    // Predicated region
    $region18: #{linear_relu.1} parent=1 // pred_check
      _
    $region19: #{linear_relu.1} parent=1 // pred_check_branch
      %42 = sbr.rel (0) target = $region21
    $region20: #{linear_relu.1} parent=1 // pred_region
      %44 = dma.done [#allocation7], 512
    $region21: #{linear_relu.1} parent=1 // pred_fallthru
      _
    %p45 = scmp.eq.s32.totalorder 0, 0
    // Predicated region
    $region22: #{linear_relu.1} parent=1 // pred_check
      %p46 = pneg %p45
    $region23: #{linear_relu.1} parent=1 // pred_check_branch
      %48 = sbr.rel (%p46) target = $region25
    $region24: #{linear_relu.1} parent=1 // pred_region
      %49 = vst [vmem:[#allocation2] sm:$0xff] 0.0
    $region25: #{linear_relu.1} parent=1 // pred_fallthru
      _
    %v50 = vld [vmem:[#allocation3] sm:$0xff]
    %v51 = vld [vmem:[#allocation6] sm:$0xff]
    %v52 = vld [vmem:[#allocation6 + $0x8] sm:$0xff]
    %v53 = vld [vmem:[#allocation6 + $0x10] sm:$0xff]
    %v54 = vld [vmem:[#allocation6 + $0x18] sm:$0xff]
    %v55 = vld [vmem:[#allocation2] sm:$0xff]
    %vm56 = vcmask 261120
    %v58 = vsel %vm56, %v50, 0
    %60 = vmatpush.msra.mxu0 0.0
    %61 = vmatpush.msra.mxu0 0.0
    %62 = vmatpush.msra.mxu0 0.0
    %63 = vmatpush.msra.mxu0 0.0
    %64 = vmatpush.msra.mxu0 0.0
    %65 = vmatpush.msra.mxu0 0.0
    %66 = vmatpush.msra.mxu0 0.0
    %67 = vmatpush.msra.mxu0 0.0
    %68 = vmatpush.msra.mxu0 0.0
    %69 = vmatpush.msra.mxu0 0.0
    %70 = vmatpush.msra.mxu0 0.0
    %71 = vmatpush.msra.mxu0 0.0
    %72 = vmatpush.msra.mxu0 %v54
    %73 = vmatpush.msra.mxu0 %v53
    %74 = vmatpush.msra.mxu0 %v52
    %75 = vmatpush.msra.mxu0 %v51
    %76 = vmatmul.f32.gmra.mxu0 %v58
    %v77 = vpop.f32.mrf.mxu0
    %v78 = vadd.f32 0.0, %v77
    %79 = vdwg.mxu0
    %v80 = vadd.f32 %v55, %v78
    %81 = vst [vmem:[#allocation2] sm:$0xff] %v80
    // Predicated region
    $region26: #{linear_relu.1} parent=1 // pred_check
      %p82 = pneg %p45
    $region27: #{linear_relu.1} parent=1 // pred_check_branch
      %84 = sbr.rel (%p82) target = $region29
    $region28: #{linear_relu.1} parent=1 // pred_region
      %v85 = vld [vmem:[#allocation2] sm:$0xff]
      %v86 = vld [vmem:[%s2] sm:$0x1]
      %v88 = vperm.slane %v86, 0
      %v90 = vadd.f32 %v85, %v88
      %v91 = vmax.f32 %v90, 0.0
      %92 = vst [vmem:[#allocation8] sm:$0xff] %v91
    $region29: #{linear_relu.1} parent=1 // pred_fallthru
      _
    // Predicated region
    $region30: #{linear_relu.1} parent=1 // pred_check
      _
    $region31: #{linear_relu.1} parent=1 // pred_check_branch
      %94 = sbr.rel (0) target = $region33
    $region32: #{linear_relu.1} parent=1 // pred_region
      %96 = vsyncadd [#allocation5], 0
      %s98 = sshll.u32 [#allocation8], 4
      %s99 = int_to_ptr.vmem [resolvable:$true] %s98
      %s100 = sshll.u32 %s3, 4
      %s101 = int_to_ptr.hbm [resolvable:$true] %s100
      %103 = dma.vmem_to_hbm [thread:$0]  %s99, 128, %s101, [#allocation5]
    $region33: #{linear_relu.1} parent=1 // pred_fallthru
      _
    // Predicated region
    $region34: #{linear_relu.1} parent=1 // pred_check
      _
    $region35: #{linear_relu.1} parent=1 // pred_check_branch
      %105 = sbr.rel (0) target = $region37
    $region36: #{linear_relu.1} parent=1 // pred_region
      %107 = dma.done [#allocation5], 128
    $region37: #{linear_relu.1} parent=1 // pred_fallthru
      _
    %108 = vsyncpa [#allocation4], 1
    %109 = vsyncpa [#allocation7], 1
    %110 = vsyncpa [#allocation5], 1

</llo_original>
